<compile_context>
chip_gen: v6e
topology: v6e:2x2x1
jax: 0.10.0
libtpu: 0.0.40
codegen_flags: <defaults>
</compile_context>

<pallas_src>
import functools

import jax
import jax.numpy as jnp
from jax.experimental import pallas as pl
from jax.experimental.pallas import tpu as pltpu


LANES = 128
SUBLANES = 8


def _masked_l1_kernel(x_ref, y_ref, m_ref, num_ref, den_ref, *,
                      total_steps, tail_rows, guard_duplicates):
    """Accumulate masked |x-y| and mask weights for one (t, 128) tile."""
    c = pl.program_id(0)                    # split axis (parallel / core_parallel)
    i = pl.program_id(1)                    # sequential reduction axis
    steps_per_split = pl.num_programs(1)
    block = c * steps_per_split + i         # LOGICAL (unclamped) block index

    # Output blocks are indexed only by `c`, so they stay resident across the
    # reduction axis: zero them on the first step of each split.
    @pl.when(i == 0)
    def _init():
        num_ref[...] = jnp.zeros_like(num_ref)
        den_ref[...] = jnp.zeros_like(den_ref)

    t, lanes = x_ref.shape

    def accumulate(mask_tail):
        w = 1.0 - m_ref[...].astype(jnp.float32)          # "masked" weight
        d = jnp.abs(x_ref[...].astype(jnp.float32) -
                    y_ref[...].astype(jnp.float32))
        num = jnp.abs(w) * d                              # |x*w - y*w| == |w|*|x-y|
        den = w
        if mask_tail:
            # Only the final logical block can contain garbage rows past the
            # end of the array; zero their contribution (row-level mask only,
            # emitted in this branch alone).
            row_ok = jax.lax.broadcasted_iota(jnp.int32, (t, lanes), 0) < tail_rows
            num = jnp.where(row_ok, num, 0.0)
            den = jnp.where(row_ok, den, 0.0)
        # Fold the (t, 128) contribution down to one (8, 128) vreg granule:
        # the reshape matches the native (8, 128) tiling (no relayout) and the
        # axis-0 sum is pure elementwise VPU adds (no XLU).
        num_ref[0] += num.reshape(t // SUBLANES, SUBLANES, lanes).sum(axis=0)
        den_ref[0] += den.reshape(t // SUBLANES, SUBLANES, lanes).sum(axis=0)

    if tail_rows:
        # Partial last block exists: full blocks take the cheap path, the tail
        # block applies the row mask, clamped duplicate blocks hit neither.
        @pl.when(block < total_steps - 1)
        def _full():
            accumulate(False)

        @pl.when(block == total_steps - 1)
        def _tail():
            accumulate(True)
    elif guard_duplicates:
        # All blocks are full, but the split axis may have clamped duplicates.
        @pl.when(block < total_steps)
        def _guarded():
            accumulate(False)
    else:
        accumulate(False)


def l1_loss_masked_mean(x, y, mask, *, tile_rows=2048, num_splits=1,
                        core_parallel=False):
    """Pallas implementation of L1LossMaskedMean.forward(x, y, mask).

    Notes:
      * Fully-masked input returns NaN/Inf (0/0), matching the PyTorch module.
      * Keep `mask` in a narrow dtype (bf16 / int8 / bool) at the call site:
        the kernel is HBM-bound and never upcasts in HBM.
      * On v7x use num_splits=2, core_parallel=True to use both TensorCores;
        on v5e/v6e leave the defaults (single TensorCore).
    """
    x = jnp.asarray(x)
    y = jnp.asarray(y)
    mask = jnp.asarray(mask)

    n = x.size
    assert y.size == n and mask.size == n, "x, y, mask must have equal numel"

    # Pad only to the minimal 8*128 granule, and only if actually needed.
    # Mask is padded with 1 (=> weight 0), x/y with 0, so the pad region
    # contributes exactly zero to both sums - no element masking required.
    granule = SUBLANES * LANES
    pad = (-n) % granule
    padded_n = n + pad
    rows = padded_n // LANES                       # always a multiple of 8

    def _prep(a, pad_value):
        flat = a.reshape(-1)                       # free view of contiguous data
        if pad:
            flat = jnp.pad(flat, (0, pad), constant_values=pad_value)
        return flat.reshape(rows, LANES)

    x2 = _prep(x, 0)
    y2 = _prep(y, 0)
    m2 = _prep(mask, 1)

    # Tile sizing: big lane-dense row tiles; respect the sublane granularity of
    # the narrowest dtype (8 for 32-bit, 16 for bf16, 32 for int8/bool) unless
    # the block covers the full row extent.
    min_item = min(x2.dtype.itemsize, y2.dtype.itemsize, m2.dtype.itemsize)
    sub = SUBLANES * max(1, 4 // max(1, int(min_item)))
    t = min(int(tile_rows), rows)
    if t != rows:
        t = max(sub, (t // sub) * sub)
        if t >= rows:
            t = rows

    total_steps = pl.cdiv(rows, t)
    tail_rows = rows - (total_steps - 1) * t
    if tail_rows == t:
        tail_rows = 0                              # last block is full

    # Split axis (across TensorCores on v7x); never more splits than blocks,
    # and never a split made purely of clamped duplicates.
    num_splits = max(1, min(int(num_splits), total_steps))
    while num_splits > 1 and (num_splits - 1) * pl.cdiv(total_steps, num_splits) >= total_steps:
        num_splits -= 1
    steps_per_split = pl.cdiv(total_steps, num_splits)
    guard_duplicates = num_splits * steps_per_split != total_steps

    def in_map(c, i):
        # Clamp so the DMA window is always legal; the kernel skips duplicate
        # logical blocks with a scalar guard, so clamped re-reads are inert.
        return (jnp.minimum(c * steps_per_split + i, total_steps - 1), 0)

    in_spec = pl.BlockSpec((t, LANES), in_map)
    out_spec = pl.BlockSpec((1, SUBLANES, LANES), lambda c, i: (c, 0, 0))

    kernel = functools.partial(
        _masked_l1_kernel,
        total_steps=total_steps,
        tail_rows=tail_rows,
        guard_duplicates=guard_duplicates,
    )

    if core_parallel and num_splits > 1:
        dim_sem = (pltpu.CORE_PARALLEL, pltpu.ARBITRARY)   # real 2-TC sharding (v7x)
    else:
        dim_sem = ("parallel", "arbitrary")

    # Double-buffered input bytes per step; only raise the scoped-VMEM limit
    # when a large tile sweep would exceed the conservative 16 MiB default.
    in_tile_bytes = t * LANES * (x2.dtype.itemsize + y2.dtype.itemsize + m2.dtype.itemsize)
    cp_kwargs = {"dimension_semantics": dim_sem}
    if 2 * in_tile_bytes > 12 * 1024 * 1024:
        cp_kwargs["vmem_limit_bytes"] = min(4 * in_tile_bytes + (4 << 20), 96 << 20)

    num, den = pl.pallas_call(
        kernel,
        out_shape=(
            jax.ShapeDtypeStruct((num_splits, SUBLANES, LANES), jnp.float32),
            jax.ShapeDtypeStruct((num_splits, SUBLANES, LANES), jnp.float32),
        ),
        grid_spec=pltpu.PrefetchScalarGridSpec(
            num_scalar_prefetch=0,
            grid=(num_splits, steps_per_split),
            in_specs=[in_spec, in_spec, in_spec],
            out_specs=[out_spec, out_spec],
        ),
        compiler_params=pltpu.CompilerParams(**cp_kwargs),
    )(x2, y2, m2)

    # One tiny final cross-lane reduce + divide outside the hot loop.
    return (jnp.sum(num) / jnp.sum(den)).astype(jnp.float32)


def _reference(x, y, mask):
    w = 1.0 - mask.astype(jnp.float32)
    x = x.astype(jnp.float32)
    y = y.astype(jnp.float32)
    return jnp.sum(jnp.abs(x * w - y * w)) / jnp.sum(w)


if __name__ == "__main__":
    key = jax.random.PRNGKey(0)

    # Case 1: aligned NCHW shapes, f32 x/y, bf16 binary mask, default tiling
    # (single full block, no padding, no tail).
    kx, ky, km, key = jax.random.split(key, 4)
    N, C, H, W = 2, 4, 16, 16
    x = jax.random.normal(kx, (N, C, H, W), dtype=jnp.float32)
    y = jax.random.normal(ky, (N, C, H, W), dtype=jnp.float32)
    mask = (jax.random.uniform(km, (N, C, H, W)) > 0.5).astype(jnp.bfloat16)

    out = jax.block_until_ready(l1_loss_masked_mean(x, y, mask))
    ref = _reference(x, y, mask)
    assert jnp.allclose(out, ref, rtol=1e-5, atol=1e-5), (out, ref)

    # Case 2: ragged numel -> exercises the pad-with-inert-mask path, small
    # tiles and a 2-way split (no duplicate blocks).
    kx2, ky2, km2, key = jax.random.split(key, 4)
    x2 = jax.random.normal(kx2, (3, 5, 7, 11), dtype=jnp.float32)
    y2 = jax.random.normal(ky2, (3, 5, 7, 11), dtype=jnp.float32)
    mask2 = (jax.random.uniform(km2, (3, 5, 7, 11)) > 0.3).astype(jnp.float32)

    out2 = jax.block_until_ready(
        l1_loss_masked_mean(x2, y2, mask2, tile_rows=8, num_splits=2))
    ref2 = _reference(x2, y2, mask2)
    assert jnp.allclose(out2, ref2, rtol=1e-5, atol=1e-5), (out2, ref2)

    # Case 3: no padding, but a partial last row-block (tail mask branch) AND
    # a clamped duplicate block on the split axis (scalar guard), bf16 mask.
    kx3, ky3, km3, key = jax.random.split(key, 4)
    x3 = jax.random.normal(kx3, (2, 20, 128), dtype=jnp.float32)
    y3 = jax.random.normal(ky3, (2, 20, 128), dtype=jnp.float32)
    mask3 = (jax.random.uniform(km3, (2, 20, 128)) > 0.5).astype(jnp.bfloat16)

    out3 = jax.block_until_ready(
        l1_loss_masked_mean(x3, y3, mask3, tile_rows=16, num_splits=2))
    ref3 = _reference(x3, y3, mask3)
    assert jnp.allclose(out3, ref3, rtol=1e-5, atol=1e-5), (out3, ref3)

    print("KERNEL_OK")
</pallas_src>

<mosaic_0001>
module attributes {stable_mosaic.version = 11 : i64} {
  func.func @_masked_l1_kernel(%arg0: i32, %arg1: i32, %arg2: memref<16x128xf32, #tpu.memory_space<vmem>>, %arg3: memref<16x128xf32, #tpu.memory_space<vmem>>, %arg4: memref<16x128xbf16, #tpu.memory_space<vmem>>, %arg5: memref<1x8x128xf32, #tpu.memory_space<vmem>>, %arg6: memref<1x8x128xf32, #tpu.memory_space<vmem>>) attributes {dimension_semantics = [#tpu.dimension_semantics<parallel>, #tpu.dimension_semantics<arbitrary>], iteration_bounds = array<i64: 1, 1>, scalar_prefetch = 0 : i64, scratch_operands = 0 : i64, tpu.core_type = #tpu.core_type<tc>, window_params = [{transform_indices = @transform_0, window_bounds = array<i64: 16, 128>}, {transform_indices = @transform_1, window_bounds = array<i64: 16, 128>}, {transform_indices = @transform_2, window_bounds = array<i64: 16, 128>}, {transform_indices = @transform_3, window_bounds = array<i64: 1, 8, 128>}, {transform_indices = @transform_4, window_bounds = array<i64: 1, 8, 128>}]} {
    %c0_i32 = arith.constant 0 : i32
    %0 = arith.cmpi eq, %arg1, %c0_i32 : i32
    %1 = arith.extui %0 : i1 to i32
    %c0_i32_0 = arith.constant 0 : i32
    %2 = arith.cmpi ne, %1, %c0_i32_0 : i32
    scf.if %2 {
      %cst_20 = arith.constant 0.000000e+00 : f32
      %29 = vector.broadcast %cst_20 : f32 to vector<1x8x128xf32>
      %c0_21 = arith.constant 0 : index
      %c0_22 = arith.constant 0 : index
      %c0_23 = arith.constant 0 : index
      %30 = vector.load %arg5[%c0_21, %c0_22, %c0_23] : memref<1x8x128xf32, #tpu.memory_space<vmem>>, vector<1x8x128xf32>
      tpu.vector_store %arg5[%c0_21, %c0_22, %c0_23], %29 {strides = array<i32>} : memref<1x8x128xf32, #tpu.memory_space<vmem>>, vector<1x8x128xf32>,
      %cst_24 = arith.constant 0.000000e+00 : f32
      %31 = vector.broadcast %cst_24 : f32 to vector<1x8x128xf32>
      %c0_25 = arith.constant 0 : index
      %c0_26 = arith.constant 0 : index
      %c0_27 = arith.constant 0 : index
      %32 = vector.load %arg6[%c0_25, %c0_26, %c0_27] : memref<1x8x128xf32, #tpu.memory_space<vmem>>, vector<1x8x128xf32>
      tpu.vector_store %arg6[%c0_25, %c0_26, %c0_27], %31 {strides = array<i32>} : memref<1x8x128xf32, #tpu.memory_space<vmem>>, vector<1x8x128xf32>,
    } else {
    }
    %c0 = arith.constant 0 : index
    %c0_1 = arith.constant 0 : index
    %3 = vector.load %arg4[%c0, %c0_1] : memref<16x128xbf16, #tpu.memory_space<vmem>>, vector<16x128xbf16>
    %4 = arith.extf %3 : vector<16x128xbf16> to vector<16x128xf32>
    %cst = arith.constant 1.000000e+00 : f32
    %5 = vector.broadcast %cst : f32 to vector<16x128xf32>
    %6 = arith.subf %5, %4 : vector<16x128xf32>
    %c0_2 = arith.constant 0 : index
    %c0_3 = arith.constant 0 : index
    %7 = vector.load %arg2[%c0_2, %c0_3] : memref<16x128xf32, #tpu.memory_space<vmem>>, vector<16x128xf32>
    %c0_4 = arith.constant 0 : index
    %c0_5 = arith.constant 0 : index
    %8 = vector.load %arg3[%c0_4, %c0_5] : memref<16x128xf32, #tpu.memory_space<vmem>>, vector<16x128xf32>
    %9 = arith.subf %7, %8 : vector<16x128xf32>
    %10 = math.absf %9 : vector<16x128xf32>
    %11 = math.absf %6 : vector<16x128xf32>
    %12 = arith.mulf %11, %10 : vector<16x128xf32>
    %c0_6 = arith.constant 0 : index
    %c0_7 = arith.constant 0 : index
    %c0_8 = arith.constant 0 : index
    %13 = vector.load %arg5[%c0_6, %c0_7, %c0_8] : memref<1x8x128xf32, #tpu.memory_space<vmem>>, vector<1x8x128xf32>
    %14 = vector.shape_cast %13 : vector<1x8x128xf32> to vector<8x128xf32>
    %15 = vector.shape_cast %12 : vector<16x128xf32> to vector<2x8x128xf32>
    %cst_9 = arith.constant dense<0.000000e+00> : vector<8x128xf32>
    %16 = vector.multi_reduction <add>, %15, %cst_9 [0] : vector<2x8x128xf32> to vector<8x128xf32>
    %17 = arith.addf %14, %16 : vector<8x128xf32>
    %c0_10 = arith.constant 0 : index
    %c0_11 = arith.constant 0 : index
    %c0_12 = arith.constant 0 : index
    %18 = vector.load %arg5[%c0_10, %c0_11, %c0_12] : memref<1x8x128xf32, #tpu.memory_space<vmem>>, vector<1x8x128xf32>
    %19 = vector.shape_cast %18 : vector<1x8x128xf32> to vector<8x128xf32>
    %20 = vector.shape_cast %17 : vector<8x128xf32> to vector<1x8x128xf32>
    tpu.vector_store %arg5[%c0_10, %c0_11, %c0_12], %20 {strides = array<i32>} : memref<1x8x128xf32, #tpu.memory_space<vmem>>, vector<1x8x128xf32>,
    %c0_13 = arith.constant 0 : index
    %c0_14 = arith.constant 0 : index
    %c0_15 = arith.constant 0 : index
    %21 = vector.load %arg6[%c0_13, %c0_14, %c0_15] : memref<1x8x128xf32, #tpu.memory_space<vmem>>, vector<1x8x128xf32>
    %22 = vector.shape_cast %21 : vector<1x8x128xf32> to vector<8x128xf32>
    %23 = vector.shape_cast %6 : vector<16x128xf32> to vector<2x8x128xf32>
    %cst_16 = arith.constant dense<0.000000e+00> : vector<8x128xf32>
    %24 = vector.multi_reduction <add>, %23, %cst_16 [0] : vector<2x8x128xf32> to vector<8x128xf32>
    %25 = arith.addf %22, %24 : vector<8x128xf32>
    %c0_17 = arith.constant 0 : index
    %c0_18 = arith.constant 0 : index
    %c0_19 = arith.constant 0 : index
    %26 = vector.load %arg6[%c0_17, %c0_18, %c0_19] : memref<1x8x128xf32, #tpu.memory_space<vmem>>, vector<1x8x128xf32>
    %27 = vector.shape_cast %26 : vector<1x8x128xf32> to vector<8x128xf32>
    %28 = vector.shape_cast %25 : vector<8x128xf32> to vector<1x8x128xf32>
    tpu.vector_store %arg6[%c0_17, %c0_18, %c0_19], %28 {strides = array<i32>} : memref<1x8x128xf32, #tpu.memory_space<vmem>>, vector<1x8x128xf32>,
    return
  }
  func.func @transform_0(%arg0: i32, %arg1: i32) -> (i32, i32) {
    %c1_i32 = arith.constant 1 : i32
    %0 = arith.muli %arg0, %c1_i32 : i32
    %1 = arith.addi %0, %arg1 : i32
    %c0_i32 = arith.constant 0 : i32
    %2 = arith.minsi %1, %c0_i32 : i32
    %c0_i32_0 = arith.constant 0 : i32
    %c0_i32_1 = arith.constant 0 : i32
    return %2, %c0_i32_0 : i32, i32
  }
  func.func @transform_1(%arg0: i32, %arg1: i32) -> (i32, i32) {
    %c1_i32 = arith.constant 1 : i32
    %0 = arith.muli %arg0, %c1_i32 : i32
    %1 = arith.addi %0, %arg1 : i32
    %c0_i32 = arith.constant 0 : i32
    %2 = arith.minsi %1, %c0_i32 : i32
    %c0_i32_0 = arith.constant 0 : i32
    %c0_i32_1 = arith.constant 0 : i32
    return %2, %c0_i32_0 : i32, i32
  }
  func.func @transform_2(%arg0: i32, %arg1: i32) -> (i32, i32) {
    %c1_i32 = arith.constant 1 : i32
    %0 = arith.muli %arg0, %c1_i32 : i32
    %1 = arith.addi %0, %arg1 : i32
    %c0_i32 = arith.constant 0 : i32
    %2 = arith.minsi %1, %c0_i32 : i32
    %c0_i32_0 = arith.constant 0 : i32
    %c0_i32_1 = arith.constant 0 : i32
    return %2, %c0_i32_0 : i32, i32
  }
  func.func @transform_3(%arg0: i32, %arg1: i32) -> (i32, i32, i32) {
    %c0_i32 = arith.constant 0 : i32
    %c0_i32_0 = arith.constant 0 : i32
    %c0_i32_1 = arith.constant 0 : i32
    return %arg0, %c0_i32, %c0_i32_0 : i32, i32, i32
  }
  func.func @transform_4(%arg0: i32, %arg1: i32) -> (i32, i32, i32) {
    %c0_i32 = arith.constant 0 : i32
    %c0_i32_0 = arith.constant 0 : i32
    %c0_i32_1 = arith.constant 0 : i32
    return %arg0, %c0_i32, %c0_i32_0 : i32, i32, i32
  }
}

</mosaic_0001>

<llo_original>
// kernel: tpu_custom_call.1
$region0: #{tpu_custom_call.1}
  #allocation0 [shape = 'u32[]', space=smem, size = 0x4, offset = 0x4, fixed_abs, tag = 'smem constant byte address 0x4 - core index']
  #allocation1 [shape = 'u32[144,128]{1,0:T(1,128)}', space=vmem, size = 0x12000, scoped, tag = 'internal scratch']
  %s0 = inlined_call_operand.hbm [shape: f32[16,128], index: 0, kind: input, shape index: {}]
  %s1 = inlined_call_operand.hbm [shape: f32[16,128], index: 1, kind: input, shape index: {}]
  %s2 = inlined_call_operand.hbm [shape: bf16[16,128], index: 2, kind: input, shape index: {}]
  %s3 = inlined_call_operand.hbm [shape: f32[1,8,128], index: 3, kind: output, shape index: {0}]
  %s4 = inlined_call_operand.hbm [shape: f32[1,8,128], index: 4, kind: output, shape index: {1}]
  %5 = xla_tuple %s3, %s4
  %s6 = sld [smem:[#allocation0]]
  $region46: #{tpu_custom_call.1} parent=0
    _
  %s8 = ssub.s32 1, %s6
  %s9 = scalar_select 0, %s8, %s6
  $region1: #{tpu_custom_call.1} parent=0
    #allocation2 [shape = 'u8[8192]{0}', space=vmem, size = 0x2000, scoped, tag = 'input window, operand 0, single buffered']
    #allocation3 [shape = 's32[1]{0}', space=sflag, size = 0x4, scoped, tag = 'scoped memory for tpu_custom_call.1']
    #allocation4 [shape = 's32[1]{0}', space=sflag, size = 0x4, scoped, tag = 'scoped memory for tpu_custom_call.1']
    #allocation5 [shape = 'u8[8192]{0}', space=vmem, size = 0x2000, scoped, tag = 'input window, operand 1, single buffered']
    #allocation6 [shape = 's32[1]{0}', space=sflag, size = 0x4, scoped, tag = 'scoped memory for tpu_custom_call.1']
    #allocation7 [shape = 'u8[4096]{0}', space=vmem, size = 0x1000, scoped, tag = 'input window, operand 2, single buffered']
    #allocation8 [shape = 'u8[4096]{0}', space=vmem, size = 0x1000, scoped, tag = 'output window, operand 0, single buffered']
    #allocation9 [shape = 'u8[4096]{0}', space=vmem, size = 0x1000, scoped, tag = 'output window, operand 1, single buffered']
    #allocation10 [shape = 's32[1]{0}', space=sflag, size = 0x4, scoped, tag = 'scoped memory for tpu_custom_call.1']
    %10 = vsyncpa [#allocation3], 0
    %11 = vsyncpa [#allocation6], 0
    %12 = vsyncpa [#allocation4], 0
    %13 = vsyncpa [#allocation10], 0
    // Predicated region
    $region2: #{tpu_custom_call.1} parent=1 // pred_check
      _
    $region3: #{tpu_custom_call.1} parent=1 // pred_check_branch
      %15 = sbr.rel (0) target = $region5
    $region4: #{tpu_custom_call.1} parent=1 // pred_region
      %s16 = sadd.s32 0, 0
      %p17 = scmp.lt.s32.totalorder %s16, 0
      %s18 = scalar_select %p17, %s16, 0
      %s19 = smul.u32 2, %s18
      %s21 = ssub.s32 256, 256
      %22 = vsyncadd [#allocation3], %s21
      %s23 = smul.addr %s19, 128
      %s24 = scalar_lea.hbm %s0, %s23
      %s25 = sshll.u32 [#allocation2], 4
      %s26 = int_to_ptr.vmem [resolvable:$true] %s25
      %31 = dma.hbm_to_vmem [thread:$0]  %s24, 256, %s26, [#allocation3], 128, 128, 8
    $region5: #{tpu_custom_call.1} parent=1 // pred_fallthru
      _
    // Predicated region
    $region6: #{tpu_custom_call.1} parent=1 // pred_check
      _
    $region7: #{tpu_custom_call.1} parent=1 // pred_check_branch
      %33 = sbr.rel (0) target = $region9
    $region8: #{tpu_custom_call.1} parent=1 // pred_region
      %s34 = sadd.s32 0, 0
      %p35 = scmp.lt.s32.totalorder %s34, 0
      %s36 = scalar_select %p35, %s34, 0
      %s37 = smul.u32 2, %s36
      %s39 = ssub.s32 256, 256
      %40 = vsyncadd [#allocation6], %s39
      %s41 = smul.addr %s37, 128
      %s42 = scalar_lea.hbm %s1, %s41
      %s43 = sshll.u32 [#allocation5], 4
      %s44 = int_to_ptr.vmem [resolvable:$true] %s43
      %49 = dma.hbm_to_vmem [thread:$0]  %s42, 256, %s44, [#allocation6], 128, 128, 8
    $region9: #{tpu_custom_call.1} parent=1 // pred_fallthru
      _
    // Predicated region
    $region10: #{tpu_custom_call.1} parent=1 // pred_check
      _
    $region11: #{tpu_custom_call.1} parent=1 // pred_check_branch
      %51 = sbr.rel (0) target = $region13
    $region12: #{tpu_custom_call.1} parent=1 // pred_region
      %s52 = sadd.s32 0, 0
      %p53 = scmp.lt.s32.totalorder %s52, 0
      %s54 = scalar_select %p53, %s52, 0
      %s55 = smul.u32 2, %s54
      %s57 = ssub.s32 128, 128
      %58 = vsyncadd [#allocation6], %s57
      %s59 = smul.addr %s55, 64
      %s60 = scalar_lea.hbm %s2, %s59
      %s61 = sshll.u32 [#allocation7], 4
      %s62 = int_to_ptr.vmem [resolvable:$true] %s61
      %67 = dma.hbm_to_vmem [thread:$0]  %s60, 128, %s62, [#allocation6], 64, 64, 4
    $region13: #{tpu_custom_call.1} parent=1 // pred_fallthru
      _
    // Predicated region
    $region14: #{tpu_custom_call.1} parent=1 // pred_check
      _
    $region15: #{tpu_custom_call.1} parent=1 // pred_check_branch
      %69 = sbr.rel (0) target = $region17
    $region16: #{tpu_custom_call.1} parent=1 // pred_region
      %70 = dma.done [#allocation3], 256
    $region17: #{tpu_custom_call.1} parent=1 // pred_fallthru
      _
    // Predicated region
    $region18: #{tpu_custom_call.1} parent=1 // pred_check
      _
    $region19: #{tpu_custom_call.1} parent=1 // pred_check_branch
      %72 = sbr.rel (0) target = $region21
    $region20: #{tpu_custom_call.1} parent=1 // pred_region
      %73 = dma.done [#allocation6], 256
    $region21: #{tpu_custom_call.1} parent=1 // pred_fallthru
      _
    // Predicated region
    $region22: #{tpu_custom_call.1} parent=1 // pred_check
      _
    $region23: #{tpu_custom_call.1} parent=1 // pred_check_branch
      %75 = sbr.rel (0) target = $region25
    $region24: #{tpu_custom_call.1} parent=1 // pred_region
      %76 = dma.done [#allocation6], 128
    $region25: #{tpu_custom_call.1} parent=1 // pred_fallthru
      _
    %s77 = sadd.s32 0, 0
    %p78 = scmp.lt.s32.totalorder %s77, 0
    %s79 = scalar_select %p78, %s77, 0
    %s80 = smul.u32 2, %s79
    %s81 = sadd.s32 0, 0
    %p82 = scmp.lt.s32.totalorder %s81, 0
    %s83 = scalar_select %p82, %s81, 0
    %s84 = smul.u32 2, %s83
    %s85 = sadd.s32 0, 0
    %p86 = scmp.lt.s32.totalorder %s85, 0
    %s87 = scalar_select %p86, %s85, 0
    %s88 = smul.u32 2, %s87
    %p89 = scmp.eq.s32.totalorder 0, 0
    // Predicated region
    $region26: #{tpu_custom_call.1} parent=1 // pred_check
      %p90 = pneg %p89
    $region27: #{tpu_custom_call.1} parent=1 // pred_check_branch
      %92 = sbr.rel (%p90) target = $region29
    $region28: #{tpu_custom_call.1} parent=1 // pred_region
      %93 = vst [vmem:[#allocation8] sm:$0xff] 0.0
      %94 = vst [vmem:[#allocation9] sm:$0xff] 0.0
    $region29: #{tpu_custom_call.1} parent=1 // pred_fallthru
      _
    %v95 = vld [vmem:[#allocation7] sm:$0xf]
    %v96 = vld [vmem:[#allocation7 + $0x4] sm:$0xf]
    %v97 = vunpack.c.l.bf16 %v95
    %v98 = vunpack.c.l.bf16 %v96
    %v99 = vsub.f32 1.0, %v97
    %v100 = vsub.f32 1.0, %v98
    %v101 = vld [vmem:[#allocation2] sm:$0xff]
    %v102 = vld [vmem:[#allocation2 + $0x8] sm:$0xff]
    %v103 = vld [vmem:[#allocation5] sm:$0xff]
    %v104 = vld [vmem:[#allocation5 + $0x8] sm:$0xff]
    %v105 = vsub.f32 %v101, %v103
    %v106 = vsub.f32 %v102, %v104
    %v107 = vand.u32 2147483647, %v105
    %v108 = vand.u32 2147483647, %v106
    %v109 = vand.u32 2147483647, %v99
    %v110 = vand.u32 2147483647, %v100
    %v111 = vmul.f32 %v109, %v107
    %v112 = vmul.f32 %v110, %v108
    %v113 = vld [vmem:[#allocation8] sm:$0xff]
    %v114 = vadd.f32 %v111, %v112
    %v115 = vadd.f32 %v113, %v114
    %116 = vst [vmem:[#allocation8] sm:$0xff] %v115
    %v117 = vld [vmem:[#allocation9] sm:$0xff]
    %v118 = vadd.f32 %v99, %v100
    %v119 = vadd.f32 %v117, %v118
    %120 = vst [vmem:[#allocation9] sm:$0xff] %v119
    // Predicated region
    $region30: #{tpu_custom_call.1} parent=1 // pred_check
      _
    $region31: #{tpu_custom_call.1} parent=1 // pred_check_branch
      %122 = sbr.rel (0) target = $region33
    $region32: #{tpu_custom_call.1} parent=1 // pred_region
      %s124 = ssub.s32 128, 128
      %125 = vsyncadd [#allocation4], %s124
      %s127 = sshll.u32 [#allocation8], 4
      %s128 = int_to_ptr.vmem [resolvable:$true] %s127
      %130 = dma.vmem_to_hbm [thread:$0]  %s128, 128, %s3, [#allocation4]
    $region33: #{tpu_custom_call.1} parent=1 // pred_fallthru
      _
    // Predicated region
    $region34: #{tpu_custom_call.1} parent=1 // pred_check
      _
    $region35: #{tpu_custom_call.1} parent=1 // pred_check_branch
      %132 = sbr.rel (0) target = $region37
    $region36: #{tpu_custom_call.1} parent=1 // pred_region
      %s134 = ssub.s32 128, 128
      %135 = vsyncadd [#allocation10], %s134
      %s137 = sshll.u32 [#allocation9], 4
      %s138 = int_to_ptr.vmem [resolvable:$true] %s137
      %140 = dma.vmem_to_hbm [thread:$0]  %s138, 128, %s4, [#allocation10]
    $region37: #{tpu_custom_call.1} parent=1 // pred_fallthru
      _
    // Predicated region
    $region38: #{tpu_custom_call.1} parent=1 // pred_check
      _
    $region39: #{tpu_custom_call.1} parent=1 // pred_check_branch
      %142 = sbr.rel (0) target = $region41
    $region40: #{tpu_custom_call.1} parent=1 // pred_region
      %143 = dma.done [#allocation4], 128
    $region41: #{tpu_custom_call.1} parent=1 // pred_fallthru
      _
    // Predicated region
    $region42: #{tpu_custom_call.1} parent=1 // pred_check
      _
    $region43: #{tpu_custom_call.1} parent=1 // pred_check_branch
      %145 = sbr.rel (0) target = $region45
    $region44: #{tpu_custom_call.1} parent=1 // pred_region
      %146 = dma.done [#allocation10], 128
    $region45: #{tpu_custom_call.1} parent=1 // pred_fallthru
      _
    %147 = vsyncpa [#allocation3], 1
    %148 = vsyncpa [#allocation6], 1
    %149 = vsyncpa [#allocation4], 1
    %150 = vsyncpa [#allocation10], 1

</llo_original>
